<compile_context>
chip_gen: v7x
topology: tpu7x:2x2x1
jax: 0.10.0
libtpu: 0.0.40
codegen_flags: <defaults>
</compile_context>

<pallas_src>
import math
import functools

import jax
import jax.numpy as jnp
from jax import lax
from jax.experimental import pallas as pl
from jax.experimental.pallas import tpu as pltpu


def _round_up(v, mult):
    return (v + mult - 1) // mult * mult


def sphereface_kernel(x_ref, wt_ref, wn_ref, label_ref, out_ref, *, s, m, eps):
    """Computes one (tm, tn) tile of SphereFace logits."""
    tm, tn = out_ref.shape

    # --- cosine similarity ---------------------------------------------------
    # MXU matmul in native operand dtype, f32 accumulation.
    ip = jnp.dot(x_ref[...], wt_ref[...], preferred_element_type=jnp.float32)  # (tm, tn)

    xf = x_ref[...].astype(jnp.float32)
    xn = jnp.sqrt(jnp.sum(xf * xf, axis=1, keepdims=True))   # (tm, 1) row norms
    wn = wn_ref[...]                                         # (1, tn) class norms (hoisted)
    cos_theta = ip / jnp.maximum(xn * wn, eps)

    c = jnp.clip(cos_theta, -1.0 + 1e-5, 1.0 - 1e-5)

    # --- cos(m*theta) via Chebyshev T_m(c); k via threshold counting ----------
    # For integer m: cos(m*acos(c)) == T_m(c), and
    #   k = floor(m*acos(c)/pi) == #{ j in [1, m) : c <= cos(j*pi/m) }
    # since cos is monotonically decreasing on [0, pi].  (Non-strict `<=` at the
    # exact thresholds coincides with floor() for these values; differences are
    # measure-zero anyway.)
    t_prev = jnp.ones_like(c)   # T_0
    t_curr = c                  # T_1
    for _ in range(2, m + 1):
        t_prev, t_curr = t_curr, 2.0 * c * t_curr - t_prev
    cos_m_theta = t_curr if m >= 1 else t_prev

    k = jnp.zeros_like(c)
    for j in range(1, m):
        thr = math.cos(j * math.pi / m)
        k = k + (c <= thr).astype(jnp.float32)
    sign = 1.0 - 2.0 * jnp.remainder(k, 2.0)
    phi_target = sign * cos_m_theta - 2.0 * k   # value at the label column
    phi_other = c                               # cos(acos(clip(c))) == clip(c) elsewhere

    # --- select the margin column using GLOBAL class indices ------------------
    col0 = pl.program_id(1) * tn
    col = col0 + lax.broadcasted_iota(jnp.int32, (tm, tn), 1)
    is_target = col == label_ref[...]           # (tm, 1) broadcast vs (tm, tn)

    phi = jnp.where(is_target, phi_target, phi_other)
    # logits = s * (cos_theta + (phi_theta - cos_theta)) = s * phi_theta
    out_ref[...] = (s * phi).astype(out_ref.dtype)


def sphereface_forward(x, weight, label, s=30.0, m=3, eps=1e-8, tm=256, tn=512):
    n, d = x.shape
    c = weight.shape[0]
    assert weight.shape[1] == d
    m = int(m)  # TODO(synk): non-integer margin m would require an in-kernel acos.

    # MXU / lane-friendly tiles: tm multiple of 8, tn multiple of 128 (lane-dense
    # output -> unmasked vst), capped to the padded problem size.
    tm = min(_round_up(tm, 8), _round_up(n, 8))
    tn = min(_round_up(tn, 128), _round_up(c, 128))
    n_p = _round_up(n, tm)
    c_p = _round_up(c, tn)

    wt = jnp.transpose(weight)                                                  # (D, C)
    # Per-class weight norms computed once in the wrapper (not per N tile).
    wn = jnp.sqrt(jnp.sum(weight.astype(jnp.float32) ** 2, axis=1))[None, :]    # (1, C)

    # Zero-pad to tile multiples; padded rows/classes produce cos=0 and are sliced off.
    x_p = jnp.pad(x, ((0, n_p - n), (0, 0)))
    wt_p = jnp.pad(wt, ((0, 0), (0, c_p - c)))
    wn_p = jnp.pad(wn, ((0, 0), (0, c_p - c)))
    lab_p = jnp.pad(label.astype(jnp.int32), (0, n_p - n), constant_values=-1)
    lab2d = lab_p.reshape(n_p, 1)

    # TODO(synk): for very large D (>~2-4K) add a K grid axis with an f32 accumulator.

    itemsize = x_p.dtype.itemsize
    tile_bytes = (tm * d + d * tn) * itemsize + tm * tn * 4 + tn * 4 + tm * 4
    vmem_limit = int(max(32 * 1024 * 1024, min(4 * tile_bytes, 64 * 1024 * 1024)))

    kernel = functools.partial(sphereface_kernel, s=float(s), m=m, eps=float(eps))
    out_p = pl.pallas_call(
        kernel,
        out_shape=jax.ShapeDtypeStruct((n_p, c_p), jnp.float32),
        grid_spec=pltpu.PrefetchScalarGridSpec(
            num_scalar_prefetch=0,
            grid=(n_p // tm, c_p // tn),
            in_specs=[
                pl.BlockSpec((tm, d), lambda i, j: (i, 0)),   # x row tile
                pl.BlockSpec((d, tn), lambda i, j: (0, j)),   # weight.T column tile
                pl.BlockSpec((1, tn), lambda i, j: (0, j)),   # hoisted class norms
                pl.BlockSpec((tm, 1), lambda i, j: (i, 0)),   # labels (global class ids)
            ],
            out_specs=pl.BlockSpec((tm, tn), lambda i, j: (i, j)),
        ),
        compiler_params=pltpu.CompilerParams(
            dimension_semantics=("parallel", "parallel"),     # megacore-shardable on v7x
            vmem_limit_bytes=vmem_limit,
        ),
        cost_estimate=pl.CostEstimate(
            flops=2 * n_p * c_p * d,
            transcendentals=0,
            bytes_accessed=(n_p * d + d * c_p) * itemsize + n_p * c_p * 4,
        ),
    )(x_p, wt_p, wn_p, lab2d)
    return out_p[:n, :c]


def _reference(x, weight, label, s, m):
    # Pure-JAX mirror of the PyTorch forward (acos / scatter / cos path).
    ip = x @ weight.T
    w1 = jnp.linalg.norm(x, axis=1)
    w2 = jnp.linalg.norm(weight, axis=1)
    cos_theta = ip / jnp.maximum(jnp.outer(w1, w2), 1e-8)
    m_theta = jnp.arccos(jnp.clip(cos_theta, -1.0 + 1e-5, 1.0 - 1e-5))
    one_hot = jax.nn.one_hot(label, weight.shape[0], dtype=jnp.float32)
    m_theta = m_theta * (1.0 + (m - 1.0) * one_hot)   # scatter_(reduce='multiply')
    kk = jnp.floor(m_theta / math.pi)
    sgn = -2.0 * jnp.remainder(kk, 2.0) + 1.0
    phi_theta = sgn * jnp.cos(m_theta) - 2.0 * kk
    return s * (cos_theta + (phi_theta - cos_theta))


if __name__ == "__main__":
    s, m = 30.0, 3

    # Config 1: module-default toy shapes (single grid step after padding C->128).
    key = jax.random.PRNGKey(0)
    kx, kw, kl = jax.random.split(key, 3)
    in_features, out_features, batch = 32, 16, 8
    bound = math.sqrt(6.0 / (in_features + out_features))   # xavier_uniform_
    weight = jax.random.uniform(
        kw, (out_features, in_features), jnp.float32, -bound, bound)
    x = jax.random.normal(kx, (batch, in_features), jnp.float32)
    label = jax.random.randint(kl, (batch,), 0, out_features)

    logits = jax.block_until_ready(sphereface_forward(x, weight, label, s=s, m=m))
    ref = _reference(x, weight, label, s, m)
    assert logits.shape == (batch, out_features)
    assert jnp.allclose(logits, ref, rtol=1e-4, atol=2e-3), (
        "config1 max abs err = %g" % float(jnp.max(jnp.abs(logits - ref))))

    # Config 2: small but multi-tile grid (exercises padding + global column offsets).
    k2x, k2w, k2l = jax.random.split(jax.random.PRNGKey(1), 3)
    in2, out2, n2 = 40, 300, 24
    bound2 = math.sqrt(6.0 / (in2 + out2))
    weight2 = jax.random.uniform(k2w, (out2, in2), jnp.float32, -bound2, bound2)
    x2 = jax.random.normal(k2x, (n2, in2), jnp.float32)
    label2 = jax.random.randint(k2l, (n2,), 0, out2)

    logits2 = jax.block_until_ready(
        sphereface_forward(x2, weight2, label2, s=s, m=m, tm=8, tn=128))
    ref2 = _reference(x2, weight2, label2, s, m)
    assert logits2.shape == (n2, out2)
    assert jnp.allclose(logits2, ref2, rtol=1e-4, atol=2e-3), (
        "config2 max abs err = %g" % float(jnp.max(jnp.abs(logits2 - ref2))))

    print("KERNEL_OK")
</pallas_src>

<mosaic_0001>
module attributes {stable_mosaic.version = 11 : i64} {
  func.func @sphereface_kernel(%arg0: i32, %arg1: i32, %arg2: memref<8x32xf32, #tpu.memory_space<vmem>>, %arg3: memref<32x128xf32, #tpu.memory_space<vmem>>, %arg4: memref<1x128xf32, #tpu.memory_space<vmem>>, %arg5: memref<8x1xi32, #tpu.memory_space<vmem>>, %arg6: memref<8x128xf32, #tpu.memory_space<vmem>>) attributes {dimension_semantics = [#tpu.dimension_semantics<parallel>, #tpu.dimension_semantics<parallel>], iteration_bounds = array<i64: 1, 1>, scalar_prefetch = 0 : i64, scratch_operands = 0 : i64, tpu.core_type = #tpu.core_type<tc>, window_params = [{transform_indices = @transform_0, window_bounds = array<i64: 8, 32>}, {transform_indices = @transform_1, window_bounds = array<i64: 32, 128>}, {transform_indices = @transform_2, window_bounds = array<i64: 1, 128>}, {transform_indices = @transform_3, window_bounds = array<i64: 8, 1>}, {transform_indices = @transform_4, window_bounds = array<i64: 8, 128>}]} {
    %c0 = arith.constant 0 : index
    %c0_0 = arith.constant 0 : index
    %0 = vector.load %arg2[%c0, %c0_0] : memref<8x32xf32, #tpu.memory_space<vmem>>, vector<8x32xf32>
    %c0_1 = arith.constant 0 : index
    %c0_2 = arith.constant 0 : index
    %1 = vector.load %arg3[%c0_1, %c0_2] : memref<32x128xf32, #tpu.memory_space<vmem>>, vector<32x128xf32>
    %cst = arith.constant dense<0.000000e+00> : vector<8x128xf32>
    %2 = tpu.matmul %0, %1, %cst {dimension_numbers = #tpu.dot_dimension_numbers<[1], [0], [0], [1], [0, 0, 1, 1], [], []>} : vector<8x32xf32>, vector<32x128xf32>, vector<8x128xf32> -> vector<8x128xf32>
    %c0_3 = arith.constant 0 : index
    %c0_4 = arith.constant 0 : index
    %3 = vector.load %arg2[%c0_3, %c0_4] : memref<8x32xf32, #tpu.memory_space<vmem>>, vector<8x32xf32>
    %4 = arith.mulf %3, %3 : vector<8x32xf32>
    %cst_5 = arith.constant dense<0.000000e+00> : vector<8xf32>
    %5 = vector.multi_reduction <add>, %4, %cst_5 [1] : vector<8x32xf32> to vector<8xf32>
    %6 = vector.shape_cast %5 : vector<8xf32> to vector<8x1xf32>
    %7 = math.sqrt %6 : vector<8x1xf32>
    %c0_6 = arith.constant 0 : index
    %c0_7 = arith.constant 0 : index
    %8 = vector.load %arg4[%c0_6, %c0_7] : memref<1x128xf32, #tpu.memory_space<vmem>>, vector<1x128xf32>
    %9 = vector.broadcast %7 : vector<8x1xf32> to vector<8x128xf32>
    %10 = vector.broadcast %8 : vector<1x128xf32> to vector<8x128xf32>
    %11 = arith.mulf %9, %10 : vector<8x128xf32>
    %cst_8 = arith.constant 9.99999993E-9 : f32
    %12 = vector.broadcast %cst_8 : f32 to vector<8x128xf32>
    %13 = arith.maximumf %11, %12 : vector<8x128xf32>
    %14 = arith.divf %2, %13 : vector<8x128xf32>
    %cst_9 = arith.constant -0.999989986 : f32
    %cst_10 = arith.constant 0.999989986 : f32
    %15 = vector.broadcast %cst_9 : f32 to vector<8x128xf32>
    %16 = arith.maximumf %15, %14 : vector<8x128xf32>
    %17 = vector.broadcast %cst_10 : f32 to vector<8x128xf32>
    %18 = arith.minimumf %17, %16 : vector<8x128xf32>
    %cst_11 = arith.constant 1.000000e+00 : f32
    %19 = vector.broadcast %cst_11 : f32 to vector<8x128xf32>
    %cst_12 = arith.constant 2.000000e+00 : f32
    %20 = vector.broadcast %cst_12 : f32 to vector<8x128xf32>
    %21 = arith.mulf %20, %18 : vector<8x128xf32>
    %22 = arith.mulf %21, %18 : vector<8x128xf32>
    %23 = arith.subf %22, %19 : vector<8x128xf32>
    %cst_13 = arith.constant 2.000000e+00 : f32
    %24 = vector.broadcast %cst_13 : f32 to vector<8x128xf32>
    %25 = arith.mulf %24, %18 : vector<8x128xf32>
    %26 = arith.mulf %25, %23 : vector<8x128xf32>
    %27 = arith.subf %26, %18 : vector<8x128xf32>
    %cst_14 = arith.constant 0.000000e+00 : f32
    %28 = vector.broadcast %cst_14 : f32 to vector<8x128xf32>
    %cst_15 = arith.constant 5.000000e-01 : f32
    %29 = vector.broadcast %cst_15 : f32 to vector<8x128xf32>
    %30 = arith.cmpf ole, %18, %29 : vector<8x128xf32>
    %31 = arith.extui %30 : vector<8x128xi1> to vector<8x128xi32>
    %32 = arith.sitofp %31 : vector<8x128xi32> to vector<8x128xf32>
    %33 = arith.addf %28, %32 : vector<8x128xf32>
    %cst_16 = arith.constant -5.000000e-01 : f32
    %34 = vector.broadcast %cst_16 : f32 to vector<8x128xf32>
    %35 = arith.cmpf ole, %18, %34 : vector<8x128xf32>
    %36 = arith.extui %35 : vector<8x128xi1> to vector<8x128xi32>
    %37 = arith.sitofp %36 : vector<8x128xi32> to vector<8x128xf32>
    %38 = arith.addf %33, %37 : vector<8x128xf32>
    %cst_17 = arith.constant 2.000000e+00 : f32
    %39 = vector.broadcast %cst_17 : f32 to vector<8x128xf32>
    %40 = arith.remf %38, %39 : vector<8x128xf32>
    %cst_18 = arith.constant 0.000000e+00 : f32
    %41 = vector.broadcast %cst_18 : f32 to vector<8x128xf32>
    %42 = arith.cmpf one, %40, %41 : vector<8x128xf32>
    %cst_19 = arith.constant 0.000000e+00 : f32
    %43 = vector.broadcast %cst_19 : f32 to vector<8x128xf32>
    %44 = arith.cmpf olt, %40, %43 : vector<8x128xf32>
    %cst_20 = arith.constant 0.000000e+00 : f32
    %45 = arith.cmpf olt, %cst_17, %cst_20 : f32
    %46 = vector.broadcast %45 : i1 to vector<8x128xi1>
    %47 = vector.broadcast %46 : vector<8x128xi1> to vector<8x128xi1>
    %48 = arith.xori %44, %47 : vector<8x128xi1>
    %49 = arith.andi %48, %42 : vector<8x128xi1>
    %50 = vector.broadcast %cst_17 : f32 to vector<8x128xf32>
    %51 = arith.addf %40, %50 : vector<8x128xf32>
    %52 = arith.select %49, %51, %40 : vector<8x128xi1>, vector<8x128xf32>
    %cst_21 = arith.constant 2.000000e+00 : f32
    %53 = vector.broadcast %cst_21 : f32 to vector<8x128xf32>
    %54 = arith.mulf %53, %52 : vector<8x128xf32>
    %cst_22 = arith.constant 1.000000e+00 : f32
    %55 = vector.broadcast %cst_22 : f32 to vector<8x128xf32>
    %56 = arith.subf %55, %54 : vector<8x128xf32>
    %57 = arith.mulf %56, %27 : vector<8x128xf32>
    %cst_23 = arith.constant 2.000000e+00 : f32
    %58 = vector.broadcast %cst_23 : f32 to vector<8x128xf32>
    %59 = arith.mulf %58, %38 : vector<8x128xf32>
    %60 = arith.subf %57, %59 : vector<8x128xf32>
    %c128_i32 = arith.constant 128 : i32
    %61 = arith.muli %arg1, %c128_i32 : i32
    %62 = tpu.iota {dimensions = array<i32: 1>} : vector<8x128xi32>
    %63 = vector.broadcast %61 : i32 to vector<8x128xi32>
    %64 = arith.addi %63, %62 : vector<8x128xi32>
    %c0_24 = arith.constant 0 : index
    %c0_25 = arith.constant 0 : index
    %65 = vector.load %arg5[%c0_24, %c0_25] : memref<8x1xi32, #tpu.memory_space<vmem>>, vector<8x1xi32>
    %66 = vector.broadcast %65 : vector<8x1xi32> to vector<8x128xi32>
    %67 = arith.cmpi eq, %64, %66 : vector<8x128xi32>
    %68 = arith.select %67, %60, %18 : vector<8x128xi1>, vector<8x128xf32>
    %cst_26 = arith.constant 3.000000e+01 : f32
    %69 = vector.broadcast %cst_26 : f32 to vector<8x128xf32>
    %70 = arith.mulf %69, %68 : vector<8x128xf32>
    %c0_27 = arith.constant 0 : index
    %c0_28 = arith.constant 0 : index
    %71 = vector.load %arg6[%c0_27, %c0_28] : memref<8x128xf32, #tpu.memory_space<vmem>>, vector<8x128xf32>
    tpu.vector_store %arg6[%c0_27, %c0_28], %70 {strides = array<i32>} : memref<8x128xf32, #tpu.memory_space<vmem>>, vector<8x128xf32>,
    return
  }
  func.func @transform_0(%arg0: i32, %arg1: i32) -> (i32, i32) {
    %c0_i32 = arith.constant 0 : i32
    %c0_i32_0 = arith.constant 0 : i32
    return %arg0, %c0_i32 : i32, i32
  }
  func.func @transform_1(%arg0: i32, %arg1: i32) -> (i32, i32) {
    %c0_i32 = arith.constant 0 : i32
    %c0_i32_0 = arith.constant 0 : i32
    return %c0_i32, %arg1 : i32, i32
  }
  func.func @transform_2(%arg0: i32, %arg1: i32) -> (i32, i32) {
    %c0_i32 = arith.constant 0 : i32
    %c0_i32_0 = arith.constant 0 : i32
    return %c0_i32, %arg1 : i32, i32
  }
  func.func @transform_3(%arg0: i32, %arg1: i32) -> (i32, i32) {
    %c0_i32 = arith.constant 0 : i32
    %c0_i32_0 = arith.constant 0 : i32
    return %arg0, %c0_i32 : i32, i32
  }
  func.func @transform_4(%arg0: i32, %arg1: i32) -> (i32, i32) {
    %c0_i32 = arith.constant 0 : i32
    return %arg0, %arg1 : i32, i32
  }
}

</mosaic_0001>

<llo_original>
// kernel: tpu_custom_call.1
$region0: #{tpu_custom_call.1}
  #allocation0 [shape = 'u32[]', space=smem, size = 0x4, offset = 0x4, fixed_abs, tag = 'smem constant byte address 0x4 - core index']
  #allocation1 [shape = 'u32[144,128]{1,0:T(1,128)}', space=vmem, size = 0x12000, scoped, tag = 'internal scratch']
  %s0 = inlined_call_operand.vmem [shape: f32[8,32], index: 0, kind: input, shape index: {}]
  %s1 = inlined_call_operand.hbm [shape: f32[32,128], index: 1, kind: input, shape index: {}]
  %s2 = inlined_call_operand.vmem [shape: f32[1,128], index: 2, kind: input, shape index: {}]
  %s3 = inlined_call_operand.vmem [shape: s32[8,1], index: 3, kind: input, shape index: {}]
  %s4 = inlined_call_operand.hbm [shape: f32[8,128], index: 4, kind: output, shape index: {}]
  %s5 = sld [smem:[#allocation0]]
  $region30: #{tpu_custom_call.1} parent=0
    _
  %s7 = ssub.s32 1, %s5
  %s8 = scalar_select 0, %s7, %s5
  $region1: #{tpu_custom_call.1} parent=0
    #allocation2 [shape = 'u8[16384]{0}', space=vmem, size = 0x4000, scoped, tag = 'input window, operand 1, single buffered']
    #allocation3 [shape = 's32[1]{0}', space=sflag, size = 0x4, scoped, tag = 'scoped memory for tpu_custom_call.1']
    #allocation4 [shape = 's32[1]{0}', space=sflag, size = 0x4, scoped, tag = 'scoped memory for tpu_custom_call.1']
    #allocation5 [shape = 'u8[4096]{0}', space=vmem, size = 0x1000, scoped, tag = 'output window, operand 0, single buffered']
    %9 = vsyncpa [#allocation3], 0
    %10 = vsyncpa [#allocation4], 0
    // Predicated region
    $region2: #{tpu_custom_call.1} parent=1 // pred_check
      _
    $region3: #{tpu_custom_call.1} parent=1 // pred_check_branch
      %12 = sbr.rel (0) target = $region5
    $region4: #{tpu_custom_call.1} parent=1 // pred_region
      _
    $region5: #{tpu_custom_call.1} parent=1 // pred_fallthru
      _
    // Predicated region
    $region6: #{tpu_custom_call.1} parent=1 // pred_check
      _
    $region7: #{tpu_custom_call.1} parent=1 // pred_check_branch
      %14 = sbr.rel (0) target = $region9
    $region8: #{tpu_custom_call.1} parent=1 // pred_region
      %s16 = ssub.s32 512, 512
      %17 = vsyncadd [#allocation3], %s16
      %s18 = sshll.u32 [#allocation2], 4
      %s19 = int_to_ptr.vmem [resolvable:$true] %s18
      %24 = dma.hbm_to_vmem [thread:$0]  %s1, 512, %s19, [#allocation3], 128, 128, 8
    $region9: #{tpu_custom_call.1} parent=1 // pred_fallthru
      _
    // Predicated region
    $region10: #{tpu_custom_call.1} parent=1 // pred_check
      _
    $region11: #{tpu_custom_call.1} parent=1 // pred_check_branch
      %26 = sbr.rel (0) target = $region13
    $region12: #{tpu_custom_call.1} parent=1 // pred_region
      _
    $region13: #{tpu_custom_call.1} parent=1 // pred_fallthru
      _
    // Predicated region
    $region14: #{tpu_custom_call.1} parent=1 // pred_check
      _
    $region15: #{tpu_custom_call.1} parent=1 // pred_check_branch
      %28 = sbr.rel (0) target = $region17
    $region16: #{tpu_custom_call.1} parent=1 // pred_region
      _
    $region17: #{tpu_custom_call.1} parent=1 // pred_fallthru
      _
    // Predicated region
    $region18: #{tpu_custom_call.1} parent=1 // pred_check
      _
    $region19: #{tpu_custom_call.1} parent=1 // pred_check_branch
      %30 = sbr.rel (0) target = $region21
    $region20: #{tpu_custom_call.1} parent=1 // pred_region
      %31 = dma.done [#allocation3], 512
    $region21: #{tpu_custom_call.1} parent=1 // pred_fallthru
      _
    %v32 = vld [vmem:[%s0] sm:$0xff]
    %v33 = vld [vmem:[#allocation2] sm:$0xff]
    %v34 = vld [vmem:[#allocation2 + $0x8] sm:$0xff]
    %v35 = vld [vmem:[#allocation2 + $0x10] sm:$0xff]
    %v36 = vld [vmem:[#allocation2 + $0x18] sm:$0xff]
    %vm37 = vcmask 261120
    %v39 = vsel %vm37, %v32, 0
    %41 = vmatprep.subr.mxu0 0.0
    %42 = vmatpush1.msra.mxu0 %v33
    %43 = vmatprep.subr.mxu0 0.0
    %44 = vmatpush1.msra.mxu0 %v34
    %45 = vmatprep.subr.mxu0 0.0
    %46 = vmatpush1.msra.mxu0 %v35
    %47 = vmatprep.subr.mxu0 0.0
    %48 = vmatpush1.msra.mxu0 %v36
    %49 = vmatprep.subr.mxu0 0.0
    %50 = vmatpush1.msra.mxu0 0.0
    %51 = vmatprep.subr.mxu0 0.0
    %52 = vmatpush1.msra.mxu0 0.0
    %53 = vmatprep.subr.mxu0 0.0
    %54 = vmatpush1.msra.mxu0 0.0
    %55 = vmatprep.subr.mxu0 0.0
    %56 = vmatpush1.msra.mxu0 0.0
    %57 = vmatprep.subr.mxu0 0.0
    %58 = vmatpush1.msra.mxu0 0.0
    %59 = vmatprep.subr.mxu0 0.0
    %60 = vmatpush1.msra.mxu0 0.0
    %61 = vmatprep.subr.mxu0 0.0
    %62 = vmatpush1.msra.mxu0 0.0
    %63 = vmatprep.subr.mxu0 0.0
    %64 = vmatpush1.msra.mxu0 0.0
    %65 = vmatprep.subr.mxu0 0.0
    %66 = vmatpush1.msra.mxu0 0.0
    %67 = vmatprep.subr.mxu0 0.0
    %68 = vmatpush1.msra.mxu0 0.0
    %69 = vmatprep.subr.mxu0 0.0
    %70 = vmatpush1.msra.mxu0 0.0
    %71 = vmatprep.subr.mxu0 0.0
    %72 = vmatpush1.msra.mxu0 0.0
    %73 = vmatprep.subr.mxu0 0.0
    %74 = vmatpush1.msra.mxu0 0.0
    %75 = vmatprep.subr.mxu0 0.0
    %76 = vmatpush1.msra.mxu0 0.0
    %77 = vmatprep.subr.mxu0 0.0
    %78 = vmatpush1.msra.mxu0 0.0
    %79 = vmatprep.subr.mxu0 0.0
    %80 = vmatpush1.msra.mxu0 0.0
    %81 = vmatprep.subr.mxu0 0.0
    %82 = vmatpush1.msra.mxu0 0.0
    %83 = vmatprep.subr.mxu0 0.0
    %84 = vmatpush1.msra.mxu0 0.0
    %85 = vmatprep.subr.mxu0 0.0
    %86 = vmatpush1.msra.mxu0 0.0
    %87 = vmatprep.subr.mxu0 0.0
    %88 = vmatpush1.msra.mxu0 0.0
    %89 = vmatprep.subr.mxu0 0.0
    %90 = vmatpush1.msra.mxu0 0.0
    %91 = vmatprep.subr.mxu0 0.0
    %92 = vmatpush1.msra.mxu0 0.0
    %93 = vmatprep.subr.mxu0 0.0
    %94 = vmatpush1.msra.mxu0 0.0
    %95 = vmatprep.subr.mxu0 0.0
    %96 = vmatpush1.msra.mxu0 0.0
    %97 = vmatprep.subr.mxu0 0.0
    %98 = vmatpush1.msra.mxu0 0.0
    %99 = vmatprep.subr.mxu0 0.0
    %100 = vmatpush1.msra.mxu0 0.0
    %101 = vmatprep.subr.mxu0 0.0
    %102 = vmatpush1.msra.mxu0 0.0
    %103 = vmatprep.subr.mxu0 0.0
    %104 = vmatpush1.msra.mxu0 0.0
    %105 = vmatprep.mubr.f32.mxu0 0.0
    %106 = vmatmul.mubr.f32.gmra.mrb[0].mxu0 %v39
    %v107 = vpop.f32.mrb[0].mxu0
    %v108 = vadd.f32 0.0, %v107
    %v109 = vpop.f32.mrb[0].mxu0
    %110 = vdwg.mxu0
    %v111 = vmul.f32 %v32, %v32
    %v112 = vsel %vm37, %v111, 0.0
    %113 = vadd.xlane.f32.xlu0 %v112
    %v114 = vpop.xlane.xlu0 %113
    %v115 = vrsqrt.pop %v114
    %v116 = vmul.f32 %v114, %v115
    %vm117 = vcmp.eq.f32.partialorder %v114, inf
    %v118 = vsel %vm117, %v114, %v116
    %vm119 = vcmp.eq.f32.partialorder %v114, 0.0
    %v120 = vand.u32 %v114, 2147483648
    %v121 = vsel %vm119, %v120, %v118
    %v122 = vld [vmem:[%s2] sm:$0x1]
    %v124 = vlaneseq
    %v125 = vshrl.u32 %v124, 7
    %v126 = vsub.s32 0, %v125
    %v127 = vrot.slane %v122, %v126
    %v129 = vmul.f32 %v121, %v127
    %v130 = vmax.f32 %v129, 1e-08
    %v131 = vrcp.pop %v130
    %v132 = vmul.f32 %v108, %v131
    %v133 = vmax.f32 %v132, -0.99999
    %v134 = vmin.f32 %v133, 0.99999
    %v135 = vmul.f32 %v134, 2.0
    %v136 = vmul.f32 %v135, %v134
    %v137 = vsub.f32 %v136, 1.0
    %v138 = vmul.f32 %v135, %v137
    %v139 = vsub.f32 %v138, %v134
    %vm140 = vcmp.le.f32.partialorder %v134, 0.5
    %v141 = vsel %vm140, 1, 0
    %v142 = vcvt.s32.f32 %v141
    %v143 = vadd.f32 %v142, 0.0
    %vm144 = vcmp.le.f32.partialorder %v134, -0.5
    %v145 = vsel %vm144, 1, 0
    %v146 = vcvt.s32.f32 %v145
    %v147 = vadd.f32 %v143, %v146
    %v148 = vand.u32 2147483647, %v147
    %v149 = vrcp.pop 2.0
    %v150 = vmul.f32 %v148, %v149
    %v151 = vfloor.f32 %v150
    %v152 = vmul.f32 %v151, 2.0
    %v153 = vsub.f32 %v148, %v152
    %vm154 = vcmp.eq.f32.partialorder %v153, 2.0
    %v155 = vsel %vm154, 0.0, %v153
    %v156 = vand.u32 2147483647, %v155
    %v157 = vand.u32 %v147, 2147483648
    %v158 = vor.u32 %v156, %v157
    %vm159 = vcmp.ne.f32.partialorder %v158, 0.0
    %vm160 = vcmp.lt.f32.partialorder %v158, 0.0
    %vm161 = vmand %vm160, %vm159
    %v162 = vadd.f32 %v158, 2.0
    %v163 = vsel %vm161, %v162, %v158
    %v164 = vmul.f32 %v163, 2.0
    %v165 = vsub.f32 1.0, %v164
    %v166 = vmul.f32 %v165, %v139
    %v167 = vmul.f32 %v147, 2.0
    %v168 = vsub.f32 %v166, %v167
    %s169 = smul.u32 0, 128
    %v170 = vlaneseq
    %v171 = vand.u32 %v170, 127
    %v172 = vstv %s169
    %v173 = vadd.s32 %v172, %v171
    %v174 = vld [vmem:[%s3] sm:$0xff]
    %175 = vset.pattern.permute.xlu0 0
    %176 = vperm.xlu0 %175, %v174
    %v177 = vpop.permute.xlu0 %176
    %vm178 = vcmp.eq.s32.totalorder %v173, %v177
    %v179 = vsel %vm178, %v168, %v134
    %v180 = vmul.f32 %v179, 30.0
    %181 = vst [vmem:[#allocation5] sm:$0xff] %v180
    // Predicated region
    $region22: #{tpu_custom_call.1} parent=1 // pred_check
      _
    $region23: #{tpu_custom_call.1} parent=1 // pred_check_branch
      %183 = sbr.rel (0) target = $region25
    $region24: #{tpu_custom_call.1} parent=1 // pred_region
      %s185 = ssub.s32 128, 128
      %186 = vsyncadd [#allocation4], %s185
      %s188 = sshll.u32 [#allocation5], 4
      %s189 = int_to_ptr.vmem [resolvable:$true] %s188
      %191 = dma.vmem_to_hbm [thread:$0]  %s189, 128, %s4, [#allocation4]
    $region25: #{tpu_custom_call.1} parent=1 // pred_fallthru
      _
    // Predicated region
    $region26: #{tpu_custom_call.1} parent=1 // pred_check
      _
    $region27: #{tpu_custom_call.1} parent=1 // pred_check_branch
      %193 = sbr.rel (0) target = $region29
    $region28: #{tpu_custom_call.1} parent=1 // pred_region
      %194 = dma.done [#allocation4], 128
    $region29: #{tpu_custom_call.1} parent=1 // pred_fallthru
      _
    %195 = vsyncpa [#allocation3], 1
    %196 = vsyncpa [#allocation4], 1

</llo_original>
